<compile_context>
chip_gen: v5e
topology: v5e:2x2
jax: 0.10.0
libtpu: 0.0.40
codegen_flags: <defaults>
</compile_context>

<pallas_src>
import functools

import jax
import jax.numpy as jnp
from jax.experimental import pallas as pl
from jax.experimental.pallas import tpu as pltpu

# ----- stand-ins for hyp.* (deterministic, in-script) -----
FEAT3D_DIM = 8          # hyp.feat3D_dim
NUM_CLASSES = 4         # num_classes
SEG_SMOOTH_COEFF = 0.1  # hyp.seg_smooth_coeff


def _vmem_budget_and_limit():
    """Generation-aware VMEM tiling budget + scoped limit (bytes)."""
    cap = None
    try:
        cap = getattr(pltpu.get_tpu_info(), "vmem_capacity_bytes", None)
    except Exception:
        cap = None
    if not cap:
        cap = 32 << 20                         # conservative fallback
    # v5e/v6e (128 MiB) -> 48 MiB tiling budget; v7x (64 MiB/TC) -> ~38 MiB.
    budget = max(8 << 20, min(int(cap * 0.6), 48 << 20))
    limit = int(min(cap, budget + (16 << 20)))  # headroom for compiler scratch
    return budget, limit


def _pick_d_tile(d, hw, cin, cout, in_bytes, out_bytes, vmem_budget_bytes):
    """Largest divisor of D whose double-buffered working set (in + out + masks)
    fits the budget, subject to the lane-tiling rule: d_tile*H*W must be a
    multiple of 128 unless the block covers the full DHW axis (d_tile == D)."""
    per_d = hw * (2 * (cin * in_bytes + cout * out_bytes) + 2 * 3 * 4)
    valid = [c for c in range(1, d + 1)
             if d % c == 0 and (c == d or (c * hw) % 128 == 0)]
    fitting = [c for c in valid if c * per_d <= vmem_budget_bytes]
    return max(fitting) if fitting else min(valid)


# ---------------------------------------------------------------------------
# Fused kernel: pointwise conv (MXU) + smoothness-loss partial sum (VPU/XLU).
# One batch x one D-tile:  x [Cin, N_tile] -> seg [Cout, N_tile],
# N_tile = d_tile * H * W flattened on the 128-lane axis.
# ---------------------------------------------------------------------------
def _segnet_fused_kernel(mask_ref, x_ref, w_ref, b_ref, seg_ref, loss_ref,
                         *, W, HW, d_tile, accumulate_loss):
    x = x_ref[0]                             # [Cin, N_tile]  (spatial on lanes)
    seg = jnp.dot(w_ref[...], x, preferred_element_type=jnp.float32) + b_ref[...]
    seg_ref[0] = seg.astype(seg_ref.dtype)   # lane-dense store, NCDHW-native

    nt = seg.shape[1]
    # Resident, precomputed validity masks (row 0: dx, row 1: dy, row 2: dz).
    # abs forward diffs via XLU roll; masking is a single multiply per term.
    g = mask_ref[0:1, :] * jnp.abs(pltpu.roll(seg, shift=nt - 1, axis=1) - seg)
    g = g + mask_ref[1:2, :] * jnp.abs(pltpu.roll(seg, shift=nt - W, axis=1) - seg)
    if d_tile > 1:
        g = g + mask_ref[2:3, :] * jnp.abs(pltpu.roll(seg, shift=nt - HW, axis=1) - seg)
    tile_sum = jnp.sum(g)

    if accumulate_loss:
        # Per-batch accumulator resident across the (sequential) D-tile axis;
        # HBM writeback happens only when the batch block index changes.
        @pl.when(pl.program_id(1) == 0)
        def _():
            loss_ref[...] = jnp.zeros_like(loss_ref)
        loss_ref[...] += tile_sum
    else:
        # parallel-D mode: independent per-(batch, tile) partials.
        loss_ref[...] = jnp.full(loss_ref.shape, tile_sum, dtype=jnp.float32)


def segnet_forward(feat, weight, bias, *, coeff=SEG_SMOOTH_COEFF,
                   d_tile=None, seg_dtype=jnp.float32, parallel_d=None):
    """feat: [B, Cin, D, H, W] (NCDHW). Returns (total_loss, seg_e [B,Cout,D,H,W])."""
    b, cin, d, h, w = feat.shape
    cout = weight.shape[0]
    hw = h * w
    dhw = d * hw

    feat_r = feat.reshape(b, cin, dhw)                  # free reshape, no transpose
    w2d = weight.reshape(cout, cin).astype(feat.dtype)  # bf16-in -> bf16 MXU operands
    b2d = bias.reshape(cout, 1).astype(jnp.float32)

    budget, vmem_limit = _vmem_budget_and_limit()
    in_bytes = jnp.dtype(feat.dtype).itemsize
    out_bytes = jnp.dtype(seg_dtype).itemsize
    if d_tile is None:
        d_tile = _pick_d_tile(d, hw, cin, cout, in_bytes, out_bytes, budget)
    if d % d_tile != 0 or (d_tile != d and (d_tile * hw) % 128 != 0):
        raise ValueError(f"invalid d_tile={d_tile} for D={d}, H*W={hw}")
    dt = d // d_tile
    n_tile = d_tile * hw

    working_set = n_tile * (2 * (cin * in_bytes + cout * out_bytes) + 2 * 3 * 4)
    if working_set > vmem_limit:
        raise ValueError(
            f"SegNet tile working set {working_set/2**20:.1f} MiB exceeds the "
            f"VMEM limit {vmem_limit/2**20:.1f} MiB (D={d}, H*W={hw}); no valid "
            f"smaller tile exists because d_tile*H*W must be a multiple of 128.")

    if parallel_d is None:
        # batch-only parallelism would idle one v7x core when B == 1
        parallel_d = (b == 1 and dt > 1)

    # Lane masks hoisted out of the kernel (depend only on within-tile position).
    lane = jnp.arange(n_tile, dtype=jnp.int32)
    masks = jnp.stack([
        ((lane % w) != (w - 1)).astype(jnp.float32),        # dx valid
        ((lane % hw) < (h - 1) * w).astype(jnp.float32),    # dy valid
        (lane < (n_tile - hw)).astype(jnp.float32),         # dz (within-tile) valid
    ], axis=0)                                              # [3, n_tile]

    kernel = functools.partial(_segnet_fused_kernel, W=w, HW=hw,
                               d_tile=d_tile, accumulate_loss=not parallel_d)

    if parallel_d:
        loss_shape = jax.ShapeDtypeStruct((b, dt, 8, 128), jnp.float32)
        loss_spec = pl.BlockSpec((1, 1, 8, 128), lambda bi, ni: (bi, ni, 0, 0))
        dims = ("parallel", "parallel")
    else:
        loss_shape = jax.ShapeDtypeStruct((b, 8, 128), jnp.float32)
        loss_spec = pl.BlockSpec((1, 8, 128), lambda bi, ni: (bi, 0, 0))
        dims = ("parallel", "arbitrary")

    seg_r, loss_parts = pl.pallas_call(
        kernel,
        out_shape=(
            jax.ShapeDtypeStruct((b, cout, dhw), seg_dtype),   # seg_e (flattened)
            loss_shape,                                        # loss partials
        ),
        grid=(b, dt),
        in_specs=[
            pl.BlockSpec((3, n_tile), lambda bi, ni: (0, 0)),      # masks (resident)
            pl.BlockSpec((1, cin, n_tile), lambda bi, ni: (bi, 0, ni)),
            pl.BlockSpec((cout, cin), lambda bi, ni: (0, 0)),
            pl.BlockSpec((cout, 1), lambda bi, ni: (0, 0)),
        ],
        out_specs=(
            pl.BlockSpec((1, cout, n_tile), lambda bi, ni: (bi, 0, ni)),
            loss_spec,
        ),
        compiler_params=pltpu.CompilerParams(
            dimension_semantics=dims,
            vmem_limit_bytes=vmem_limit),
    )(masks, feat_r, w2d, b2d)

    seg_e = seg_r.reshape(b, cout, d, h, w)   # free reshape; already NCDHW

    if parallel_d:
        loss_sum = jnp.sum(loss_parts[:, :, 0, 0])
    else:
        loss_sum = jnp.sum(loss_parts[:, 0, 0])

    if dt > 1:
        # Cross-D-tile dz seams from seg_e boundary slabs (tiny: 2*(dt-1) slabs).
        prev_last = seg_e[:, :, d_tile - 1: d - 1: d_tile].astype(jnp.float32)
        next_first = seg_e[:, :, d_tile::d_tile].astype(jnp.float32)
        loss_sum = loss_sum + jnp.sum(jnp.abs(next_first - prev_last))

    denom = float(b * cout * d * h * w)
    total_loss = (coeff / denom) * loss_sum
    return total_loss, seg_e


# ---------------------------------------------------------------------------
# SegNet module (forward only).
# ---------------------------------------------------------------------------
class SegNetPallas:
    def __init__(self, num_classes, feat_dim, key):
        self.num_classes = num_classes
        self.feat_dim = feat_dim
        kw, kb = jax.random.split(key)
        # nn.Conv3d(kernel_size=1) default init: U(-sqrt(k), sqrt(k)), k = 1/Cin
        bound = 1.0 / (feat_dim ** 0.5)
        self.weight = jax.random.uniform(
            kw, (num_classes, feat_dim, 1, 1, 1), jnp.float32, -bound, bound)
        self.bias = jax.random.uniform(
            kb, (num_classes,), jnp.float32, -bound, bound)

    def forward(self, feat, seg_g=None, occ_g=None, free_g=None, summ_writer=None,
                d_tile=None, seg_dtype=jnp.float32, parallel_d=None):
        # feat: [B, Cin, D, H, W]  (NCDHW, same as PyTorch).  Pass feat as bf16 and/or
        # seg_dtype=jnp.bfloat16 on v5e/v6e to roughly halve HBM traffic (compute
        # stays f32 via preferred_element_type).
        # TODO(synk): compute_loss / cross-entropy branch (seg_g is not None) and
        # summ_writer visualizations are not implemented (forward defaults skip them).
        return segnet_forward(feat, self.weight, self.bias,
                              coeff=SEG_SMOOTH_COEFF, d_tile=d_tile,
                              seg_dtype=seg_dtype, parallel_d=parallel_d)


if __name__ == "__main__":
    key = jax.random.PRNGKey(0)
    k_feat, k_param = jax.random.split(key)

    B, D, H, W = 2, 8, 8, 8
    feat = jax.random.normal(k_feat, (B, FEAT3D_DIM, D, H, W), jnp.float32)

    net = SegNetPallas(NUM_CLASSES, FEAT3D_DIM, k_param)

    # plain-JAX reference
    w2d = net.weight.reshape(NUM_CLASSES, FEAT3D_DIM)
    seg_ref = (jnp.einsum("bcdhw,kc->bkdhw", feat, w2d)
               + net.bias[None, :, None, None, None])
    dz = jnp.abs(jnp.diff(seg_ref, axis=2))
    dy = jnp.abs(jnp.diff(seg_ref, axis=3))
    dx = jnp.abs(jnp.diff(seg_ref, axis=4))
    denom = B * NUM_CLASSES * D * H * W
    loss_ref = SEG_SMOOTH_COEFF * (dz.sum() + dy.sum() + dx.sum()) / denom

    # 1) default tiling (whole DHW per batch in one lane-dense tile)
    total_loss, seg_e = net.forward(feat)
    total_loss, seg_e = jax.block_until_ready((total_loss, seg_e))
    assert seg_e.shape == (B, NUM_CLASSES, D, H, W)
    assert jnp.allclose(seg_e, seg_ref, atol=1e-4, rtol=1e-4)
    assert jnp.allclose(total_loss, loss_ref, atol=1e-5, rtol=1e-4)

    # 2) forced smaller D-tile: exercises the wrapper dz-seam path (dt > 1)
    total_loss2, seg_e2 = net.forward(feat, d_tile=2)
    total_loss2, seg_e2 = jax.block_until_ready((total_loss2, seg_e2))
    assert jnp.allclose(seg_e2, seg_ref, atol=1e-4, rtol=1e-4)
    assert jnp.allclose(total_loss2, loss_ref, atol=1e-5, rtol=1e-4)

    # 3) forced fully-parallel grid (per-tile loss partials, both axes "parallel")
    total_loss3, seg_e3 = net.forward(feat, d_tile=2, parallel_d=True)
    total_loss3, seg_e3 = jax.block_until_ready((total_loss3, seg_e3))
    assert jnp.allclose(seg_e3, seg_ref, atol=1e-4, rtol=1e-4)
    assert jnp.allclose(total_loss3, loss_ref, atol=1e-5, rtol=1e-4)

    print("KERNEL_OK")
</pallas_src>

<mosaic_0001>
module attributes {stable_mosaic.version = 11 : i64} {
  func.func @_segnet_fused_kernel(%arg0: i32, %arg1: i32, %arg2: memref<3x512xf32, #tpu.memory_space<vmem>>, %arg3: memref<1x8x512xf32, #tpu.memory_space<vmem>>, %arg4: memref<4x8xf32, #tpu.memory_space<vmem>>, %arg5: memref<4x1xf32, #tpu.memory_space<vmem>>, %arg6: memref<1x4x512xf32, #tpu.memory_space<vmem>>, %arg7: memref<1x8x128xf32, #tpu.memory_space<vmem>>) attributes {dimension_semantics = [#tpu.dimension_semantics<parallel>, #tpu.dimension_semantics<arbitrary>], iteration_bounds = array<i64: 2, 1>, scalar_prefetch = 0 : i64, scratch_operands = 0 : i64, tpu.core_type = #tpu.core_type<tc>, window_params = [{pipeline_mode = #tpu.pipeline_mode<synchronous>, transform_indices = @transform_0, window_bounds = array<i64: 3, 512>}, {transform_indices = @transform_1, window_bounds = array<i64: 1, 8, 512>}, {pipeline_mode = #tpu.pipeline_mode<synchronous>, transform_indices = @transform_2, window_bounds = array<i64: 4, 8>}, {pipeline_mode = #tpu.pipeline_mode<synchronous>, transform_indices = @transform_3, window_bounds = array<i64: 4, 1>}, {transform_indices = @transform_4, window_bounds = array<i64: 1, 4, 512>}, {transform_indices = @transform_5, window_bounds = array<i64: 1, 8, 128>}]} {
    %c0 = arith.constant 0 : index
    %c0_0 = arith.constant 0 : index
    %c0_1 = arith.constant 0 : index
    %0 = vector.load %arg3[%c0, %c0_0, %c0_1] : memref<1x8x512xf32, #tpu.memory_space<vmem>>, vector<1x8x512xf32>
    %1 = vector.shape_cast %0 : vector<1x8x512xf32> to vector<8x512xf32>
    %c0_2 = arith.constant 0 : index
    %c0_3 = arith.constant 0 : index
    %2 = vector.load %arg4[%c0_2, %c0_3] : memref<4x8xf32, #tpu.memory_space<vmem>>, vector<4x8xf32>
    %cst = arith.constant dense<0.000000e+00> : vector<4x512xf32>
    %3 = tpu.matmul %2, %1, %cst {dimension_numbers = #tpu.dot_dimension_numbers<[1], [0], [0], [1], [0, 0, 1, 1], [], []>} : vector<4x8xf32>, vector<8x512xf32>, vector<4x512xf32> -> vector<4x512xf32>
    %c0_4 = arith.constant 0 : index
    %c0_5 = arith.constant 0 : index
    %4 = vector.load %arg5[%c0_4, %c0_5] : memref<4x1xf32, #tpu.memory_space<vmem>>, vector<4x1xf32>
    %5 = vector.broadcast %4 : vector<4x1xf32> to vector<4x512xf32>
    %6 = arith.addf %3, %5 : vector<4x512xf32>
    %c0_6 = arith.constant 0 : index
    %c0_7 = arith.constant 0 : index
    %c0_8 = arith.constant 0 : index
    %7 = vector.load %arg6[%c0_6, %c0_7, %c0_8] : memref<1x4x512xf32, #tpu.memory_space<vmem>>, vector<1x4x512xf32>
    %8 = vector.shape_cast %7 : vector<1x4x512xf32> to vector<4x512xf32>
    %9 = vector.shape_cast %6 : vector<4x512xf32> to vector<1x4x512xf32>
    tpu.vector_store %arg6[%c0_6, %c0_7, %c0_8], %9 {strides = array<i32>} : memref<1x4x512xf32, #tpu.memory_space<vmem>>, vector<1x4x512xf32>,
    %c0_9 = arith.constant 0 : index
    %c0_10 = arith.constant 0 : index
    %10 = vector.load %arg2[%c0_9, %c0_10] : memref<3x512xf32, #tpu.memory_space<vmem>>, vector<1x512xf32>
    %c511_i32 = arith.constant 511 : i32
    %11 = tpu.dynamic_rotate %6 by %c511_i32 dim 1 : vector<4x512xf32>, i32 -> vector<4x512xf32>
    %12 = arith.subf %11, %6 : vector<4x512xf32>
    %13 = math.absf %12 : vector<4x512xf32>
    %14 = vector.broadcast %10 : vector<1x512xf32> to vector<4x512xf32>
    %15 = arith.mulf %14, %13 : vector<4x512xf32>
    %c1 = arith.constant 1 : index
    %c0_11 = arith.constant 0 : index
    %16 = vector.load %arg2[%c1, %c0_11] : memref<3x512xf32, #tpu.memory_space<vmem>>, vector<1x512xf32>
    %c504_i32 = arith.constant 504 : i32
    %17 = tpu.dynamic_rotate %6 by %c504_i32 dim 1 : vector<4x512xf32>, i32 -> vector<4x512xf32>
    %18 = arith.subf %17, %6 : vector<4x512xf32>
    %19 = math.absf %18 : vector<4x512xf32>
    %20 = vector.broadcast %16 : vector<1x512xf32> to vector<4x512xf32>
    %21 = arith.mulf %20, %19 : vector<4x512xf32>
    %22 = arith.addf %15, %21 : vector<4x512xf32>
    %c2 = arith.constant 2 : index
    %c0_12 = arith.constant 0 : index
    %23 = vector.load %arg2[%c2, %c0_12] : memref<3x512xf32, #tpu.memory_space<vmem>>, vector<1x512xf32>
    %c448_i32 = arith.constant 448 : i32
    %24 = tpu.dynamic_rotate %6 by %c448_i32 dim 1 : vector<4x512xf32>, i32 -> vector<4x512xf32>
    %25 = arith.subf %24, %6 : vector<4x512xf32>
    %26 = math.absf %25 : vector<4x512xf32>
    %27 = vector.broadcast %23 : vector<1x512xf32> to vector<4x512xf32>
    %28 = arith.mulf %27, %26 : vector<4x512xf32>
    %29 = arith.addf %22, %28 : vector<4x512xf32>
    %30 = vector.shape_cast %29 : vector<4x512xf32> to vector<1x4x512xf32>
    %cst_13 = arith.constant dense<0.000000e+00> : vector<1xf32>
    %31 = vector.multi_reduction <add>, %30, %cst_13 [1, 2] : vector<1x4x512xf32> to vector<1xf32>
    %32 = vector.shape_cast %31 : vector<1xf32> to vector<1x1x1xf32>
    %33 = vector.extract %32[0, 0, 0] : f32 from vector<1x1x1xf32>
    %c0_i32 = arith.constant 0 : i32
    %34 = arith.cmpi eq, %arg1, %c0_i32 : i32
    %35 = arith.extui %34 : i1 to i32
    %c0_i32_14 = arith.constant 0 : i32
    %36 = arith.cmpi ne, %35, %c0_i32_14 : i32
    scf.if %36 {
      %cst_21 = arith.constant 0.000000e+00 : f32
      %41 = vector.broadcast %cst_21 : f32 to vector<1x8x128xf32>
      %c0_22 = arith.constant 0 : index
      %c0_23 = arith.constant 0 : index
      %c0_24 = arith.constant 0 : index
      %42 = vector.load %arg7[%c0_22, %c0_23, %c0_24] : memref<1x8x128xf32, #tpu.memory_space<vmem>>, vector<1x8x128xf32>
      tpu.vector_store %arg7[%c0_22, %c0_23, %c0_24], %41 {strides = array<i32>} : memref<1x8x128xf32, #tpu.memory_space<vmem>>, vector<1x8x128xf32>,
    } else {
    }
    %c0_15 = arith.constant 0 : index
    %c0_16 = arith.constant 0 : index
    %c0_17 = arith.constant 0 : index
    %37 = vector.load %arg7[%c0_15, %c0_16, %c0_17] : memref<1x8x128xf32, #tpu.memory_space<vmem>>, vector<1x8x128xf32>
    %38 = vector.broadcast %33 : f32 to vector<1x8x128xf32>
    %39 = arith.addf %37, %38 : vector<1x8x128xf32>
    %c0_18 = arith.constant 0 : index
    %c0_19 = arith.constant 0 : index
    %c0_20 = arith.constant 0 : index
    %40 = vector.load %arg7[%c0_18, %c0_19, %c0_20] : memref<1x8x128xf32, #tpu.memory_space<vmem>>, vector<1x8x128xf32>
    tpu.vector_store %arg7[%c0_18, %c0_19, %c0_20], %39 {strides = array<i32>} : memref<1x8x128xf32, #tpu.memory_space<vmem>>, vector<1x8x128xf32>,
    return
  }
  func.func @transform_0(%arg0: i32, %arg1: i32) -> (i32, i32) {
    %c0_i32 = arith.constant 0 : i32
    %c0_i32_0 = arith.constant 0 : i32
    %c0_i32_1 = arith.constant 0 : i32
    return %c0_i32, %c0_i32_0 : i32, i32
  }
  func.func @transform_1(%arg0: i32, %arg1: i32) -> (i32, i32, i32) {
    %c0_i32 = arith.constant 0 : i32
    %c0_i32_0 = arith.constant 0 : i32
    return %arg0, %c0_i32, %arg1 : i32, i32, i32
  }
  func.func @transform_2(%arg0: i32, %arg1: i32) -> (i32, i32) {
    %c0_i32 = arith.constant 0 : i32
    %c0_i32_0 = arith.constant 0 : i32
    %c0_i32_1 = arith.constant 0 : i32
    return %c0_i32, %c0_i32_0 : i32, i32
  }
  func.func @transform_3(%arg0: i32, %arg1: i32) -> (i32, i32) {
    %c0_i32 = arith.constant 0 : i32
    %c0_i32_0 = arith.constant 0 : i32
    %c0_i32_1 = arith.constant 0 : i32
    return %c0_i32, %c0_i32_0 : i32, i32
  }
  func.func @transform_4(%arg0: i32, %arg1: i32) -> (i32, i32, i32) {
    %c0_i32 = arith.constant 0 : i32
    %c0_i32_0 = arith.constant 0 : i32
    return %arg0, %c0_i32, %arg1 : i32, i32, i32
  }
  func.func @transform_5(%arg0: i32, %arg1: i32) -> (i32, i32, i32) {
    %c0_i32 = arith.constant 0 : i32
    %c0_i32_0 = arith.constant 0 : i32
    %c0_i32_1 = arith.constant 0 : i32
    return %arg0, %c0_i32, %c0_i32_0 : i32, i32, i32
  }
}

</mosaic_0001>

<llo_original>
// kernel: tpu_custom_call.1
$region0: #{tpu_custom_call.1}
  #allocation0 [shape = 'u32[]', space=smem, size = 0x4, offset = 0x4, fixed_abs, tag = 'smem constant byte address 0x4 - core index']
  #allocation1 [shape = 'u32[72,128]{1,0:T(1,128)}', space=vmem, size = 0x9000, scoped, tag = 'internal scratch']
  %s0 = inlined_call_operand.hbm [shape: f32[3,512], index: 0, kind: input, shape index: {}]
  %s1 = inlined_call_operand.hbm [shape: f32[2,8,512], index: 1, kind: input, shape index: {}]
  %s2 = inlined_call_operand.vmem [shape: f32[4,8], index: 2, kind: input, shape index: {}]
  %s3 = inlined_call_operand.vmem [shape: f32[4,1], index: 3, kind: input, shape index: {}]
  %s4 = inlined_call_operand.hbm [shape: f32[2,4,512], index: 4, kind: output, shape index: {0}]
  %s5 = inlined_call_operand.hbm [shape: f32[2,8,128], index: 5, kind: output, shape index: {1}]
  %6 = xla_tuple %s4, %s5
  %s7 = sld [smem:[#allocation0]]
  $region69: #{tpu_custom_call.1} parent=0
    _
  %s9 = ssub.s32 1, %s7
  %s10 = scalar_select 0, %s9, %s7
  $region1: #{tpu_custom_call.1} parent=0
    #allocation2 [shape = 'u8[8192]{0}', space=vmem, size = 0x2000, scoped, tag = 'input window, operand 0, single buffered']
    #allocation3 [shape = 's32[2]{0}', space=sflag, size = 0x8, scoped, tag = 'scoped memory for tpu_custom_call.1']
    #allocation4 [shape = 's32[2]{0}', space=sflag, size = 0x8, scoped, tag = 'scoped memory for tpu_custom_call.1']
    #allocation5 [shape = 'u8[32768]{0}', space=vmem, size = 0x8000, scoped, tag = 'input window, operand 1']
    #allocation6 [shape = 's32[2]{0}', space=sflag, size = 0x8, scoped, tag = 'scoped memory for tpu_custom_call.1']
    #allocation7 [shape = 'u8[16384]{0}', space=vmem, size = 0x4000, scoped, tag = 'output window, operand 0']
    #allocation8 [shape = 'u8[8192]{0}', space=vmem, size = 0x2000, scoped, tag = 'output window, operand 1']
    #allocation9 [shape = 's32[2]{0}', space=sflag, size = 0x8, scoped, tag = 'scoped memory for tpu_custom_call.1']
    %11 = vsyncpa [#allocation3], 0
    %12 = vsyncpa [#allocation6], 0
    %s13 = scalar_lea.sflag [#allocation6], 1
    %14 = vsyncpa %s13, 0
    %15 = vsyncpa [#allocation4], 0
    %s16 = scalar_lea.sflag [#allocation4], 1
    %17 = vsyncpa %s16, 0
    %18 = vsyncpa [#allocation9], 0
    %s19 = scalar_lea.sflag [#allocation9], 1
    %20 = vsyncpa %s19, 0
    loop: start=0, step=1, limit=4
    $region2: #{tpu_custom_call.1} parent=1 // loop_pre_header
      _
    $region3: #{tpu_custom_call.1} parent=1 // loop_header
      %s22 = sphi 0, %s26
      %p23 = scmp.ge.s32.totalorder %s22, 4
      %s29 = sphi 0, %s41
      %s30 = sphi 0, %s37
      %s31 = sphi 0, %s29
      %s32 = sphi 0, %s30
      %s33 = sphi 0, %s31
      %s34 = sphi 0, %s32
      %s42 = sphi 0, %s42
      %s44 = sphi 0, %s42
      %s45 = sphi 0, %s44
      %s59 = sphi 0, %s45
      %s67 = sphi 0, %s69
      %s70 = sphi 0, %s67
      %s71 = sphi 0, %s70
      %s87 = sphi 0, %s71
      %s91 = sphi 0, %s91
      %s93 = sphi 0, %s91
      %s94 = sphi 0, %s93
      %s108 = sphi 0, %s94
      %s112 = sphi 0, %s112
      %s114 = sphi 0, %s112
      %s115 = sphi 0, %s114
      %s129 = sphi 0, %s115
      %s137 = sphi 0, %s139
      %s140 = sphi 0, %s137
      %s141 = sphi 0, %s140
      %s157 = sphi 0, %s141
      %s163 = sphi 0, %s165
      %s166 = sphi 0, %s163
      %s167 = sphi 0, %s166
      %s183 = sphi 0, %s167
    $region4: #{tpu_custom_call.1} parent=1 // loop_header_branch
      %25 = sbr.rel (%p23) target = $region8
    $region5: #{tpu_custom_call.1} parent=1 // loop_body
      %s27 = ssub.s32 %s22, 1
      %s28 = ssub.s32 %s22, 2
      %s35 = sadd.s32 1, %s30
      %p36 = scmp.ge.s32.totalorder %s35, 1
      %s37 = scalar_select %p36, 0, %s35
      %s38 = sadd.s32 1, %s29
      %s39 = scalar_select %p36, %s38, %s29
      %p40 = scmp.ge.s32.totalorder %s39, 2
      %s41 = scalar_select %p40, 0, %s39
      %s43 = sadd.s32 %s42, 1
      %p46 = scmp.eq.s32.totalorder %s22, 1
      %p47 = scmp.ne.s32.totalorder %s42, %s44
      %p48 = scmp.eq.s32.totalorder %s22, 0
      %p49 = por %p47, %p48
      %p50 = scmp.ne.s32.totalorder %s42, %s44
      %p51 = scmp.eq.s32.totalorder %s27, 1
      %p52 = por %p50, %p51
      %p53 = scmp.ne.s32.totalorder %s44, %s45
      %p54 = scmp.eq.s32.totalorder %s27, 0
      %p55 = por %p53, %p54
      %p56 = scmp.ne.s32.totalorder %s44, %s45
      %p57 = scmp.eq.s32.totalorder %s28, 1
      %p58 = por %p56, %p57
      %p60 = scmp.ne.s32.totalorder %s45, %s59
      %p61 = scmp.eq.s32.totalorder %s28, 0
      %p62 = por %p60, %p61
      %s63 = ssub.s32 %s29, %s41
      %s64 = ssub.s32 %s30, %s37
      %s65 = sor.u32 %s63, %s64
      %p66 = scmp.eq.s32.totalorder %s65, 0
      %s68 = sadd.s32 %s67, 1
      %s69 = scalar_select %p66, %s67, %s68
      %p72 = pneg %p66
      %p73 = scmp.eq.s32.totalorder %s22, 1
      %p74 = por %p72, %p73
      %p75 = scmp.ne.s32.totalorder %s67, %s70
      %p76 = scmp.eq.s32.totalorder %s22, 0
      %p77 = por %p75, %p76
      %p78 = scmp.ne.s32.totalorder %s67, %s70
      %p79 = scmp.eq.s32.totalorder %s27, 1
      %p80 = por %p78, %p79
      %p81 = scmp.ne.s32.totalorder %s70, %s71
      %p82 = scmp.eq.s32.totalorder %s27, 0
      %p83 = por %p81, %p82
      %p84 = scmp.ne.s32.totalorder %s70, %s71
      %p85 = scmp.eq.s32.totalorder %s28, 1
      %p86 = por %p84, %p85
      %p88 = scmp.ne.s32.totalorder %s71, %s87
      %p89 = scmp.eq.s32.totalorder %s28, 0
      %p90 = por %p88, %p89
      %s92 = sadd.s32 %s91, 1
      %p95 = scmp.eq.s32.totalorder %s22, 1
      %p96 = scmp.ne.s32.totalorder %s91, %s93
      %p97 = scmp.eq.s32.totalorder %s22, 0
      %p98 = por %p96, %p97
      %p99 = scmp.ne.s32.totalorder %s91, %s93
      %p100 = scmp.eq.s32.totalorder %s27, 1
      %p101 = por %p99, %p100
      %p102 = scmp.ne.s32.totalorder %s93, %s94
      %p103 = scmp.eq.s32.totalorder %s27, 0
      %p104 = por %p102, %p103
      %p105 = scmp.ne.s32.totalorder %s93, %s94
      %p106 = scmp.eq.s32.totalorder %s28, 1
      %p107 = por %p105, %p106
      %p109 = scmp.ne.s32.totalorder %s94, %s108
      %p110 = scmp.eq.s32.totalorder %s28, 0
      %p111 = por %p109, %p110
      %s113 = sadd.s32 %s112, 1
      %p116 = scmp.eq.s32.totalorder %s22, 1
      %p117 = scmp.ne.s32.totalorder %s112, %s114
      %p118 = scmp.eq.s32.totalorder %s22, 0
      %p119 = por %p117, %p118
      %p120 = scmp.ne.s32.totalorder %s112, %s114
      %p121 = scmp.eq.s32.totalorder %s27, 1
      %p122 = por %p120, %p121
      %p123 = scmp.ne.s32.totalorder %s114, %s115
      %p124 = scmp.eq.s32.totalorder %s27, 0
      %p125 = por %p123, %p124
      %p126 = scmp.ne.s32.totalorder %s114, %s115
      %p127 = scmp.eq.s32.totalorder %s28, 1
      %p128 = por %p126, %p127
      %p130 = scmp.ne.s32.totalorder %s115, %s129
      %p131 = scmp.eq.s32.totalorder %s28, 0
      %p132 = por %p130, %p131
      %s133 = ssub.s32 %s29, %s41
      %s134 = ssub.s32 %s30, %s37
      %s135 = sor.u32 %s133, %s134
      %p136 = scmp.eq.s32.totalorder %s135, 0
      %s138 = sadd.s32 %s137, 1
      %s139 = scalar_select %p136, %s137, %s138
      %p142 = pneg %p136
      %p143 = scmp.eq.s32.totalorder %s22, 1
      %p144 = por %p142, %p143
      %p145 = scmp.ne.s32.totalorder %s137, %s140
      %p146 = scmp.eq.s32.totalorder %s22, 0
      %p147 = por %p145, %p146
      %p148 = scmp.ne.s32.totalorder %s137, %s140
      %p149 = scmp.eq.s32.totalorder %s27, 1
      %p150 = por %p148, %p149
      %p151 = scmp.ne.s32.totalorder %s140, %s141
      %p152 = scmp.eq.s32.totalorder %s27, 0
      %p153 = por %p151, %p152
      %p154 = scmp.ne.s32.totalorder %s140, %s141
      %p155 = scmp.eq.s32.totalorder %s28, 1
      %p156 = por %p154, %p155
      %p158 = scmp.ne.s32.totalorder %s141, %s157
      %p159 = scmp.eq.s32.totalorder %s28, 0
      %p160 = por %p158, %p159
      %s161 = ssub.s32 %s29, %s41
      %p162 = scmp.eq.s32.totalorder %s161, 0
      %s164 = sadd.s32 %s163, 1
      %s165 = scalar_select %p162, %s163, %s164
      %p168 = pneg %p162
      %p169 = scmp.eq.s32.totalorder %s22, 1
      %p170 = por %p168, %p169
      %p171 = scmp.ne.s32.totalorder %s163, %s166
      %p172 = scmp.eq.s32.totalorder %s22, 0
      %p173 = por %p171, %p172
      %p174 = scmp.ne.s32.totalorder %s163, %s166
      %p175 = scmp.eq.s32.totalorder %s27, 1
      %p176 = por %p174, %p175
      %p177 = scmp.ne.s32.totalorder %s166, %s167
      %p178 = scmp.eq.s32.totalorder %s27, 0
      %p179 = por %p177, %p178
      %p180 = scmp.ne.s32.totalorder %s166, %s167
      %p181 = scmp.eq.s32.totalorder %s28, 1
      %p182 = por %p180, %p181
      %p184 = scmp.ne.s32.totalorder %s167, %s183
      %p185 = scmp.eq.s32.totalorder %s28, 0
      %p186 = por %p184, %p185
      %p187 = scmp.le.s32.totalorder 1, %s22
      %p188 = scmp.lt.s32.totalorder %s22, 3
      %p189 = pnand %p187, %p188
      %p190 = pneg %p189
      // Predicated region
      $region9: #{tpu_custom_call.1} parent=5 // pred_check
        _
      $region10: #{tpu_custom_call.1} parent=5 // pred_check_branch
        %192 = sbr.rel (%p189) target = $region12
      $region11: #{tpu_custom_call.1} parent=5 // pred_region
        %s193 = ssub.s32 %s22, 1
        // Predicated region
        $region13: #{tpu_custom_call.1} parent=11 // pred_check
          %p194 = pneg %p55
        $region14: #{tpu_custom_call.1} parent=11 // pred_check_branch
          %196 = sbr.rel (%p194) target = $region16
        $region15: #{tpu_custom_call.1} parent=11 // pred_region
          %198 = vsyncadd [#allocation3], 0
          %s200 = sshll.u32 %s0, 4
          %s201 = int_to_ptr.hbm [resolvable:$true] %s200
          %s202 = sshll.u32 [#allocation2], 4
          %s203 = int_to_ptr.vmem [resolvable:$true] %s202
          %205 = dma.hbm_to_vmem [thread:$0]  %s201, 256, %s203, [#allocation3]
        $region16: #{tpu_custom_call.1} parent=11 // pred_fallthru
          _
        // Predicated region
        $region17: #{tpu_custom_call.1} parent=11 // pred_check
          %p206 = pneg %p104
        $region18: #{tpu_custom_call.1} parent=11 // pred_check_branch
          %208 = sbr.rel (%p206) target = $region20
        $region19: #{tpu_custom_call.1} parent=11 // pred_region
          _
        $region20: #{tpu_custom_call.1} parent=11 // pred_fallthru
          _
        // Predicated region
        $region21: #{tpu_custom_call.1} parent=11 // pred_check
          %p209 = pneg %p125
        $region22: #{tpu_custom_call.1} parent=11 // pred_check_branch
          %211 = sbr.rel (%p209) target = $region24
        $region23: #{tpu_custom_call.1} parent=11 // pred_region
          _
        $region24: #{tpu_custom_call.1} parent=11 // pred_fallthru
          _
      $region12: #{tpu_custom_call.1} parent=5 // pred_fallthru
        _
      %p212 = scmp.lt.s32.totalorder %s22, 2
      // Predicated region
      $region25: #{tpu_custom_call.1} parent=5 // pred_check
        %p213 = pneg %p212
      $region26: #{tpu_custom_call.1} parent=5 // pred_check_branch
        %215 = sbr.rel (%p213) target = $region28
      $region27: #{tpu_custom_call.1} parent=5 // pred_region
        // Predicated region
        $region29: #{tpu_custom_call.1} parent=27 // pred_check
          %p216 = pneg %p77
        $region30: #{tpu_custom_call.1} parent=27 // pred_check_branch
          %218 = sbr.rel (%p216) target = $region32
        $region31: #{tpu_custom_call.1} parent=27 // pred_region
          %s219 = sand.u32 %s67, 1
          %s220 = scalar_lea.sflag [#allocation6], %s219
          %s221 = sand.u32 %s67, 1
          %s222 = smul.addr %s221, 32
          %s223 = scalar_lea.vmem [#allocation5], %s222
          %s224 = smul.u32 4, %s30
          %226 = vsyncadd %s220, 0
          %s227 = smul.addr %s29, 4
          %s228 = sadd.s32 %s224, %s227
          %s229 = smul.addr %s228, 8
          %s230 = scalar_lea.hbm %s1, %s229
          %s232 = sshll.u32 %s230, 4
          %s233 = int_to_ptr.hbm [resolvable:$true] %s232
          %s234 = sshll.u32 %s223, 4
          %s235 = int_to_ptr.vmem [resolvable:$true] %s234
          %237 = dma.hbm_to_vmem [thread:$0]  %s233, 512, %s235, %s220
        $region32: #{tpu_custom_call.1} parent=27 // pred_fallthru
          _
      $region28: #{tpu_custom_call.1} parent=5 // pred_fallthru
        _
      %p238 = scmp.le.s32.totalorder 1, %s22
      %p239 = scmp.lt.s32.totalorder %s22, 3
      %p240 = pnand %p238, %p239
      %p241 = pneg %p240
      // Predicated region
      $region33: #{tpu_custom_call.1} parent=5 // pred_check
        _
      $region34: #{tpu_custom_call.1} parent=5 // pred_check_branch
        %243 = sbr.rel (%p240) target = $region36
      $region35: #{tpu_custom_call.1} parent=5 // pred_region
        %s244 = ssub.s32 %s22, 1
        // Predicated region
        $region37: #{tpu_custom_call.1} parent=35 // pred_check
          %p245 = pneg %p55
        $region38: #{tpu_custom_call.1} parent=35 // pred_check_branch
          %247 = sbr.rel (%p245) target = $region40
        $region39: #{tpu_custom_call.1} parent=35 // pred_region
          %249 = dma.done [#allocation3], 256
        $region40: #{tpu_custom_call.1} parent=35 // pred_fallthru
          _
        %s250 = sand.u32 %s70, 1
        %s251 = scalar_lea.sflag [#allocation6], %s250
        %s252 = sand.u32 %s70, 1
        %s253 = smul.addr %s252, 32
        %s254 = scalar_lea.vmem [#allocation5], %s253
        // Predicated region
        $region41: #{tpu_custom_call.1} parent=35 // pred_check
          %p255 = pneg %p83
        $region42: #{tpu_custom_call.1} parent=35 // pred_check_branch
          %257 = sbr.rel (%p255) target = $region44
        $region43: #{tpu_custom_call.1} parent=35 // pred_region
          %259 = dma.done %s251, 512
        $region44: #{tpu_custom_call.1} parent=35 // pred_fallthru
          _
        %p260 = pneg %p55
        %p261 = pneg %p52
        %s262 = sand.u32 %s70, 1
        %s263 = scalar_lea.sflag [#allocation6], %s262
        %s264 = sand.u32 %s70, 1
        %s265 = smul.addr %s264, 32
        %s266 = scalar_lea.vmem [#allocation5], %s265
        %p267 = pneg %p83
        %p268 = pneg %p80
        %p269 = pneg %p104
        %p270 = pneg %p101
        %p271 = pneg %p125
        %p272 = pneg %p122
        %p273 = pneg %p153
        %p274 = pneg %p150
        %s275 = sand.u32 %s140, 1
        %s276 = scalar_lea.sflag [#allocation4], %s275
        %s277 = sand.u32 %s140, 1
        %s278 = smul.addr %s277, 16
        %s279 = scalar_lea.vmem [#allocation7], %s278
        %p280 = pneg %p179
        %p281 = pneg %p176
        %s282 = sand.u32 %s166, 1
        %s283 = scalar_lea.sflag [#allocation9], %s282
        %s284 = sand.u32 %s166, 1
        %s285 = smul.addr %s284, 8
        %s286 = scalar_lea.vmem [#allocation8], %s285
        %s287 = smul.u32 4, %s32
        %s288 = smul.u32 4, %s32
        %v289 = vld [vmem:[%s254] sm:$0xff]
        %v290 = vld [vmem:[%s254 + $0x8] sm:$0xff]
        %v291 = vld [vmem:[%s254 + $0x10] sm:$0xff]
        %v292 = vld [vmem:[%s254 + $0x18] sm:$0xff]
        %v293 = vld [vmem:[%s2] sm:$0xf]
        %v294 = vld [vmem:[%s3] sm:$0xf]
        %296 = vset.pattern.permute.xlu0 0
        %297 = vperm.xlu0 %296, %v294
        %v298 = vpop.permute.xlu0 %297
        %vm300 = vcmask 64512
        %v302 = vsel %vm300, %v293, 0
        %304 = vmatpush.msra.mxu0 0.0
        %305 = vmatpush.msra.mxu0 0.0
        %306 = vmatpush.msra.mxu0 0.0
        %307 = vmatpush.msra.mxu0 0.0
        %308 = vmatpush.msra.mxu0 0.0
        %309 = vmatpush.msra.mxu0 0.0
        %310 = vmatpush.msra.mxu0 0.0
        %311 = vmatpush.msra.mxu0 0.0
        %312 = vmatpush.msra.mxu0 0.0
        %313 = vmatpush.msra.mxu0 0.0
        %314 = vmatpush.msra.mxu0 0.0
        %315 = vmatpush.msra.mxu0 0.0
        %316 = vmatpush.msra.mxu0 0.0
        %317 = vmatpush.msra.mxu0 0.0
        %318 = vmatpush.msra.mxu0 0.0
        %319 = vmatpush.msra.mxu0 %v289
        %320 = vmatmul.f32.gmra.mxu0 %v302
        %v321 = vpop.f32.mrf.mxu0
        %v322 = vadd.f32 %v298, %v321
        %323 = vdwg.mxu0
        %324 = vmatpush.msra.mxu0 0.0
        %325 = vmatpush.msra.mxu0 0.0
        %326 = vmatpush.msra.mxu0 0.0
        %327 = vmatpush.msra.mxu0 0.0
        %328 = vmatpush.msra.mxu0 0.0
        %329 = vmatpush.msra.mxu0 0.0
        %330 = vmatpush.msra.mxu0 0.0
        %331 = vmatpush.msra.mxu0 0.0
        %332 = vmatpush.msra.mxu0 0.0
        %333 = vmatpush.msra.mxu0 0.0
        %334 = vmatpush.msra.mxu0 0.0
        %335 = vmatpush.msra.mxu0 0.0
        %336 = vmatpush.msra.mxu0 0.0
        %337 = vmatpush.msra.mxu0 0.0
        %338 = vmatpush.msra.mxu0 0.0
        %339 = vmatpush.msra.mxu0 %v290
        %340 = vmatmul.f32.gmra.mxu0 %v302
        %v341 = vpop.f32.mrf.mxu0
        %v342 = vadd.f32 %v298, %v341
        %343 = vdwg.mxu0
        %344 = vmatpush.msra.mxu0 0.0
        %345 = vmatpush.msra.mxu0 0.0
        %346 = vmatpush.msra.mxu0 0.0
        %347 = vmatpush.msra.mxu0 0.0
        %348 = vmatpush.msra.mxu0 0.0
        %349 = vmatpush.msra.mxu0 0.0
        %350 = vmatpush.msra.mxu0 0.0
        %351 = vmatpush.msra.mxu0 0.0
        %352 = vmatpush.msra.mxu0 0.0
        %353 = vmatpush.msra.mxu0 0.0
        %354 = vmatpush.msra.mxu0 0.0
        %355 = vmatpush.msra.mxu0 0.0
        %356 = vmatpush.msra.mxu0 0.0
        %357 = vmatpush.msra.mxu0 0.0
        %358 = vmatpush.msra.mxu0 0.0
        %359 = vmatpush.msra.mxu0 %v291
        %360 = vmatmul.f32.gmra.mxu0 %v302
        %v361 = vpop.f32.mrf.mxu0
        %v362 = vadd.f32 %v298, %v361
        %363 = vdwg.mxu0
        %364 = vmatpush.msra.mxu0 0.0
        %365 = vmatpush.msra.mxu0 0.0
        %366 = vmatpush.msra.mxu0 0.0
        %367 = vmatpush.msra.mxu0 0.0
        %368 = vmatpush.msra.mxu0 0.0
        %369 = vmatpush.msra.mxu0 0.0
        %370 = vmatpush.msra.mxu0 0.0
        %371 = vmatpush.msra.mxu0 0.0
        %372 = vmatpush.msra.mxu0 0.0
        %373 = vmatpush.msra.mxu0 0.0
        %374 = vmatpush.msra.mxu0 0.0
        %375 = vmatpush.msra.mxu0 0.0
        %376 = vmatpush.msra.mxu0 0.0
        %377 = vmatpush.msra.mxu0 0.0
        %378 = vmatpush.msra.mxu0 0.0
        %379 = vmatpush.msra.mxu0 %v292
        %380 = vmatmul.f32.gmra.mxu0 %v302
        %v381 = vpop.f32.mrf.mxu0
        %v382 = vadd.f32 %v298, %v381
        %383 = vdwg.mxu0
        %v388 = vrot.slane %v342, 4
        %v389 = vrot.slane %v382, 4
        %vm390 = vcmask 1043456
        %v391 = vsel %vm390, %v322, %v388
        %v392 = vsel %vm390, %v362, %v389
        %395 = vst [vmem:[%s279] sm:$0xff] %v391
        %396 = vst [vmem:[%s279 + $0x8] sm:$0xff] %v392
        %v397 = vld [vmem:[#allocation2] ss:$4 sm:$0xf]
        %398 = vrot.lane.b32.xlu0 %v322, 127
        %v399 = vpop.permute.xlu0 %398
        %400 = vrot.lane.b32.xlu0 %v342, 127
        %v401 = vpop.permute.xlu0 %400
        %402 = vrot.lane.b32.xlu0 %v362, 127
        %v403 = vpop.permute.xlu0 %402
        %404 = vrot.lane.b32.xlu0 %v382, 127
        %v405 = vpop.permute.xlu0 %404
        %v406 = vlaneseq
        %v407 = vand.u32 %v406, 127
        %vm408 = vcmp.lt.s32.totalorder %v407, 127
        %v409 = vsel %vm408, %v403, %v405
        %v410 = vsel %vm408, %v401, %v403
        %v411 = vsel %vm408, %v399, %v401
        %v412 = vsel %vm408, %v405, %v399
        %v413 = vsub.f32 %v411, %v322
        %v414 = vsub.f32 %v410, %v342
        %v415 = vsub.f32 %v409, %v362
        %v416 = vsub.f32 %v412, %v382
        %v417 = vand.u32 2147483647, %v413
        %v418 = vand.u32 2147483647, %v414
        %v419 = vand.u32 2147483647, %v415
        %v420 = vand.u32 2147483647, %v416
        %v422 = vperm.slane %v397, 0
        %v423 = vperm.slane %v397, 1
        %v424 = vperm.slane %v397, 2
        %v425 = vperm.slane %v397, 3
        %v430 = vmul.f32 %v422, %v417
        %v431 = vmul.f32 %v423, %v418
        %v432 = vmul.f32 %v424, %v419
        %v433 = vmul.f32 %v425, %v420
        %s434 = scalar_lea.vmem [#allocation2], 1
        %v435 = vld [vmem:[%s434] ss:$4 sm:$0xf]
        %436 = vrot.lane.b32.xlu0 %v322, 120
        %v437 = vpop.permute.xlu0 %436
        %438 = vrot.lane.b32.xlu0 %v342, 120
        %v439 = vpop.permute.xlu0 %438
        %440 = vrot.lane.b32.xlu0 %v362, 120
        %v441 = vpop.permute.xlu0 %440
        %442 = vrot.lane.b32.xlu0 %v382, 120
        %v443 = vpop.permute.xlu0 %442
        %vm444 = vcmp.lt.s32.totalorder %v407, 120
        %v445 = vsel %vm444, %v441, %v443
        %v446 = vsel %vm444, %v439, %v441
        %v447 = vsel %vm444, %v437, %v439
        %v448 = vsel %vm444, %v443, %v437
        %v449 = vsub.f32 %v447, %v322
        %v450 = vsub.f32 %v446, %v342
        %v451 = vsub.f32 %v445, %v362
        %v452 = vsub.f32 %v448, %v382
        %v453 = vand.u32 2147483647, %v449
        %v454 = vand.u32 2147483647, %v450
        %v455 = vand.u32 2147483647, %v451
        %v456 = vand.u32 2147483647, %v452
        %v458 = vperm.slane %v435, 0
        %v459 = vperm.slane %v435, 1
        %v460 = vperm.slane %v435, 2
        %v461 = vperm.slane %v435, 3
        %v466 = vmul.f32 %v458, %v453
        %v467 = vmul.f32 %v459, %v454
        %v468 = vmul.f32 %v460, %v455
        %v469 = vmul.f32 %v461, %v456
        %v470 = vadd.f32 %v430, %v466
        %v471 = vadd.f32 %v431, %v467
        %v472 = vadd.f32 %v432, %v468
        %v473 = vadd.f32 %v433, %v469
        %s474 = scalar_lea.vmem [#allocation2], 2
        %v475 = vld [vmem:[%s474] ss:$4 sm:$0xf]
        %476 = vrot.lane.b32.xlu0 %v322, 64
        %v477 = vpop.permute.xlu0 %476
        %478 = vrot.lane.b32.xlu0 %v342, 64
        %v479 = vpop.permute.xlu0 %478
        %480 = vrot.lane.b32.xlu0 %v362, 64
        %v481 = vpop.permute.xlu0 %480
        %482 = vrot.lane.b32.xlu0 %v382, 64
        %v483 = vpop.permute.xlu0 %482
        %vm484 = vcmp.lt.s32.totalorder %v407, 64
        %v485 = vsel %vm484, %v481, %v483
        %v486 = vsel %vm484, %v479, %v481
        %v487 = vsel %vm484, %v477, %v479
        %v488 = vsel %vm484, %v483, %v477
        %v489 = vsub.f32 %v487, %v322
        %v490 = vsub.f32 %v486, %v342
        %v491 = vsub.f32 %v485, %v362
        %v492 = vsub.f32 %v488, %v382
        %v493 = vand.u32 2147483647, %v489
        %v494 = vand.u32 2147483647, %v490
        %v495 = vand.u32 2147483647, %v491
        %v496 = vand.u32 2147483647, %v492
        %v498 = vperm.slane %v475, 0
        %v499 = vperm.slane %v475, 1
        %v500 = vperm.slane %v475, 2
        %v501 = vperm.slane %v475, 3
        %v506 = vmul.f32 %v498, %v493
        %v507 = vmul.f32 %v499, %v494
        %v508 = vmul.f32 %v500, %v495
        %v509 = vmul.f32 %v501, %v496
        %v510 = vadd.f32 %v470, %v506
        %v511 = vadd.f32 %v471, %v507
        %v512 = vadd.f32 %v472, %v508
        %v513 = vadd.f32 %v473, %v509
        %v514 = vsel %vm390, %v510, 0.0
        %v515 = vsel %vm390, %v511, 0.0
        %v516 = vadd.f32 %v514, %v515
        %v517 = vsel %vm390, %v512, 0.0
        %v518 = vadd.f32 %v516, %v517
        %v519 = vsel %vm390, %v513, 0.0
        %v520 = vadd.f32 %v518, %v519
        %521 = vadd.xlane.f32.xlu0 %v520
        %v522 = vpop.xlane.xlu0 %521
        %v523 = vrot.slane %v522, 4
        %v524 = vadd.f32 %v522, %v523
        %v525 = vrot.slane %v524, 2
        %v526 = vadd.f32 %v524, %v525
        %v527 = vrot.slane %v526, 1
        %v528 = vadd.f32 %v526, %v527
        %s529 = vtos %v528
        %p530 = scmp.eq.s32.totalorder %s32, 0
        // Predicated region
        $region45: #{tpu_custom_call.1} parent=35 // pred_check
          %p531 = pneg %p530
        $region46: #{tpu_custom_call.1} parent=35 // pred_check_branch
          %533 = sbr.rel (%p531) target = $region48
        $region47: #{tpu_custom_call.1} parent=35 // pred_region
          %534 = vst [vmem:[%s286] sm:$0xff] 0.0
        $region48: #{tpu_custom_call.1} parent=35 // pred_fallthru
          _
        %v535 = vld [vmem:[%s286] sm:$0xff]
        %v536 = vstv %s529
        %v537 = vadd.f32 %v535, %v536
        %538 = vst [vmem:[%s286] sm:$0xff] %v537
        %s539 = sand.u32 %s140, 1
        %s540 = scalar_lea.sflag [#allocation4], %s539
        %s541 = sand.u32 %s140, 1
        %s542 = smul.addr %s541, 16
        %s543 = scalar_lea.vmem [#allocation7], %s542
        %s544 = sand.u32 %s166, 1
        %s545 = scalar_lea.sflag [#allocation9], %s544
        %s546 = sand.u32 %s166, 1
        %s547 = smul.addr %s546, 8
        %s548 = scalar_lea.vmem [#allocation8], %s547
        // Predicated region
        $region49: #{tpu_custom_call.1} parent=35 // pred_check
          %p549 = pneg %p150
        $region50: #{tpu_custom_call.1} parent=35 // pred_check_branch
          %551 = sbr.rel (%p549) target = $region52
        $region51: #{tpu_custom_call.1} parent=35 // pred_region
          %s552 = smul.u32 4, %s32
          %554 = vsyncadd %s540, 0
          %s555 = smul.addr %s31, 4
          %s556 = sadd.s32 %s552, %s555
          %s557 = smul.addr %s556, 4
          %s558 = scalar_lea.hbm %s4, %s557
          %s560 = sshll.u32 %s543, 4
          %s561 = int_to_ptr.vmem [resolvable:$true] %s560
          %s562 = sshll.u32 %s558, 4
          %s563 = int_to_ptr.hbm [resolvable:$true] %s562
          %565 = dma.vmem_to_hbm [thread:$0]  %s561, 256, %s563, %s540
        $region52: #{tpu_custom_call.1} parent=35 // pred_fallthru
          _
        // Predicated region
        $region53: #{tpu_custom_call.1} parent=35 // pred_check
          %p566 = pneg %p176
        $region54: #{tpu_custom_call.1} parent=35 // pred_check_branch
          %568 = sbr.rel (%p566) target = $region56
        $region55: #{tpu_custom_call.1} parent=35 // pred_region
          %570 = vsyncadd %s545, 0
          %s571 = smul.addr %s31, 8
          %s572 = scalar_lea.hbm %s5, %s571
          %s574 = sshll.u32 %s548, 4
          %s575 = int_to_ptr.vmem [resolvable:$true] %s574
          %s576 = sshll.u32 %s572, 4
          %s577 = int_to_ptr.hbm [resolvable:$true] %s576
          %579 = dma.vmem_to_hbm [thread:$0]  %s575, 128, %s577, %s545
        $region56: #{tpu_custom_call.1} parent=35 // pred_fallthru
          _
      $region36: #{tpu_custom_call.1} parent=5 // pred_fallthru
        _
      %p580 = scmp.le.s32.totalorder 2, %s22
      // Predicated region
      $region57: #{tpu_custom_call.1} parent=5 // pred_check
        %p581 = pneg %p580
      $region58: #{tpu_custom_call.1} parent=5 // pred_check_branch
        %583 = sbr.rel (%p581) target = $region60
      $region59: #{tpu_custom_call.1} parent=5 // pred_region
        %s584 = ssub.s32 %s22, 2
        // Predicated region
        $region61: #{tpu_custom_call.1} parent=59 // pred_check
          %p585 = pneg %p156
        $region62: #{tpu_custom_call.1} parent=59 // pred_check_branch
          %587 = sbr.rel (%p585) target = $region64
        $region63: #{tpu_custom_call.1} parent=59 // pred_region
          %s588 = sand.u32 %s141, 1
          %s589 = scalar_lea.sflag [#allocation4], %s588
          %s590 = sand.u32 %s141, 1
          %s591 = smul.addr %s590, 16
          %s592 = scalar_lea.vmem [#allocation7], %s591
          %594 = dma.done %s589, 256
        $region64: #{tpu_custom_call.1} parent=59 // pred_fallthru
          _
        // Predicated region
        $region65: #{tpu_custom_call.1} parent=59 // pred_check
          %p595 = pneg %p182
        $region66: #{tpu_custom_call.1} parent=59 // pred_check_branch
          %597 = sbr.rel (%p595) target = $region68
        $region67: #{tpu_custom_call.1} parent=59 // pred_region
          %s598 = sand.u32 %s167, 1
          %s599 = scalar_lea.sflag [#allocation9], %s598
          %s600 = sand.u32 %s167, 1
          %s601 = smul.addr %s600, 8
          %s602 = scalar_lea.vmem [#allocation8], %s601
          %604 = dma.done %s599, 128
        $region68: #{tpu_custom_call.1} parent=59 // pred_fallthru
          _
      $region60: #{tpu_custom_call.1} parent=5 // pred_fallthru
        _
    $region6: #{tpu_custom_call.1} parent=1 // loop_footer
      %s26 = sadd.s32 1, %s22
    $region7: #{tpu_custom_call.1} parent=1 // loop_footer_branch
      %21 = sbr.rel target = $region3
    $region8: #{tpu_custom_call.1} parent=1 // loop_exit
      _
    %605 = vsyncpa [#allocation3], 1
    %s606 = scalar_lea.sflag [#allocation3], 1
    %607 = vsyncpa %s606, 1
    %608 = vsyncpa [#allocation6], 1
    %s609 = scalar_lea.sflag [#allocation6], 1
    %610 = vsyncpa %s609, 1
    %611 = vsyncpa [#allocation4], 1
    %s612 = scalar_lea.sflag [#allocation4], 1
    %613 = vsyncpa %s612, 1
    %614 = vsyncpa [#allocation9], 1
    %s615 = scalar_lea.sflag [#allocation9], 1
    %616 = vsyncpa %s615, 1

</llo_original>
